<compile_context>
chip_gen: v7x
topology: tpu7x:2x2x1
jax: 0.10.0
libtpu: 0.0.40
codegen_flags: <defaults>
</compile_context>

<pallas_src>
import jax
import jax.numpy as jnp
from jax.experimental import pallas as pl
from jax.experimental.pallas import tpu as pltpu

_MIB = 1024 * 1024


def _round_up(x, m):
    return ((x + m - 1) // m) * m


def _dotprod_attn_kernel(f_ref, q_ref, m_ref, o_ref):
    # f_ref: (NB, L, D)  feature block               (input dtype)
    # q_ref: (NB, D)     aspect vectors              (input dtype)
    # m_ref: (NB, L)     mask (0/1 or soft), f32
    # o_ref: (NB, D)     output block (lane-dense last dim)
    f = f_ref[...]
    q = q_ref[...]
    m = m_ref[...]

    # scores[b, l] = sum_d f[b, l, d] * q[b, d]  -- VPU multiply + f32-acc reduce.
    scores = jnp.sum(f * q[:, None, :], axis=-1, dtype=jnp.float32)   # (NB, L)

    # Exact PyTorch mask_logits semantics (valid for soft masks too).
    logits = scores * m + (1.0 - m) * (-1e30)

    # Numerically stable softmax over L with an exact divide.
    logits = logits - jnp.max(logits, axis=-1, keepdims=True)
    e = jnp.exp(logits)
    attn = e / jnp.sum(e, axis=-1, keepdims=True)                     # (NB, L) f32

    # out[b, d] = sum_l attn[b, l] * f[b, l, d]   (f32 accumulation)
    out = jnp.sum(f * attn[:, :, None], axis=1)                       # (NB, D) f32
    o_ref[...] = out.astype(o_ref.dtype)


def _vmem_budgets():
    """(bytes budgeted for kernel data, vmem_limit_bytes) per TPU generation."""
    try:
        kind = jax.devices()[0].device_kind.lower()
    except Exception:
        kind = ""
    if "v7" in kind:                       # 64 MiB physical VMEM per TensorCore
        return 36 * _MIB, 48 * _MIB
    if "v5" in kind or "v6" in kind:       # 128 MiB physical VMEM
        return 80 * _MIB, 100 * _MIB
    return 36 * _MIB, 48 * _MIB            # unknown chip: conservative (v7x) numbers


def _per_row_vmem_bytes(L, D, itemsize):
    """Conservative VMEM bytes per batch row using padded (sublane, lane) tiles,
    including the full-tile f32 product temporaries of the two contractions."""
    l_sub = _round_up(max(L, 1), 8)
    d_lane = max(128, _round_up(max(D, 1), 128))
    l_lane = max(128, _round_up(max(L, 1), 128))
    feat = l_sub * d_lane * itemsize          # one padded (L, D) feature row-slice
    temp = l_sub * d_lane * 4                 # one full-tile f32 temporary
    vecs = d_lane * (2 * itemsize + 4) * 2    # aspect_v + out (double-buffered)
    small = l_lane * 4 * 6                    # mask + softmax intermediates
    return 2 * feat + 3 * temp + vecs + small  # 2x feat: double-buffered input


def _pick_block_n(N, L, D, itemsize, data_budget):
    per_row = _per_row_vmem_bytes(L, D, itemsize)
    budget_rows = max(8, (data_budget // per_row) // 8 * 8)
    if N <= 8 or (N < 16 and N <= budget_rows):
        # Tiny batch: one block spanning the whole batch dim (a full-extent
        # block dim is exempt from the 8-sublane rule) -> no padding, no ragged edge.
        return N
    block_n = min(budget_rows, _round_up(N, 8))
    if N >= 16:
        # Keep >= 2 grid steps so both v7x TensorCores get work.
        block_n = min(block_n, max(8, _round_up((N + 1) // 2, 8)))
    return block_n


def dotprod_attention(feature, aspect_v, dmask, *, block_n=None):
    """feature [N, L, D], aspect_v [N, D], dmask [N, L] -> out [N, D]."""
    N, L, D = feature.shape
    dtype = feature.dtype

    data_budget, vmem_limit = _vmem_budgets()
    if block_n is None:
        block_n = _pick_block_n(N, L, D, jnp.dtype(dtype).itemsize, data_budget)
    else:
        block_n = min(block_n, N)
        if block_n != N:
            block_n = max(8, (block_n // 8) * 8)   # sublane rule for partial blocks

    mask = dmask.astype(jnp.float32)
    # TODO(synk): for D not a multiple of 128 (e.g. D=32) lane occupancy is low;
    # a model-level layout change (pad D to 128 or fold L into the lane axis)
    # would recover the remaining store/VPU efficiency.

    grid = (pl.cdiv(N, block_n),)
    out = pl.pallas_call(
        _dotprod_attn_kernel,
        out_shape=jax.ShapeDtypeStruct((N, D), dtype),
        grid=grid,
        in_specs=[
            pl.BlockSpec((block_n, L, D), lambda n: (n, 0, 0)),
            pl.BlockSpec((block_n, D), lambda n: (n, 0)),
            pl.BlockSpec((block_n, L), lambda n: (n, 0)),
        ],
        out_specs=pl.BlockSpec((block_n, D), lambda n: (n, 0)),
        compiler_params=pltpu.CompilerParams(
            dimension_semantics=("parallel",),
            vmem_limit_bytes=vmem_limit,
        ),
    )(feature, aspect_v, mask)
    return out


def _reference(feature, aspect_v, dmask):
    # Pure-JAX reference mirroring the PyTorch forward exactly.
    scores = jnp.einsum("nld,nd->nl", feature, aspect_v)              # (N, L)
    logits = scores * dmask + (1.0 - dmask) * (-1e30)
    attn = jax.nn.softmax(logits, axis=1)                             # (N, L)
    return jnp.einsum("nld,nl->nd", feature, attn)                    # (N, D)


if __name__ == "__main__":
    key = jax.random.PRNGKey(0)
    k = jax.random.split(key, 6)

    # Case 1: module-sized small shapes (single full-extent block, grid=(1,)).
    N, L, D = 2, 8, 32
    feature = jax.random.normal(k[0], (N, L, D), dtype=jnp.float32)
    aspect_v = jax.random.normal(k[1], (N, D), dtype=jnp.float32)
    dmask = (jax.random.uniform(k[2], (N, L)) > 0.3).astype(jnp.float32)
    dmask = dmask.at[:, 0].set(1.0)   # at least one valid position per row

    out = dotprod_attention(feature, aspect_v, dmask)
    jax.block_until_ready(out)
    ref = _reference(feature, aspect_v, dmask)
    assert out.shape == (N, D)
    assert jnp.allclose(out, ref, atol=1e-4, rtol=1e-4), float(
        jnp.max(jnp.abs(out - ref)))

    # Case 2: ragged multi-block batch (no padding copy; partial tail block).
    N2 = 37
    feature2 = jax.random.normal(k[3], (N2, L, D), dtype=jnp.float32)
    aspect2 = jax.random.normal(k[4], (N2, D), dtype=jnp.float32)
    dmask2 = (jax.random.uniform(k[5], (N2, L)) > 0.3).astype(jnp.float32)
    dmask2 = dmask2.at[:, 0].set(1.0)

    out2 = dotprod_attention(feature2, aspect2, dmask2, block_n=16)
    jax.block_until_ready(out2)
    ref2 = _reference(feature2, aspect2, dmask2)
    assert out2.shape == (N2, D)
    assert jnp.allclose(out2, ref2, atol=1e-4, rtol=1e-4), float(
        jnp.max(jnp.abs(out2 - ref2)))

    print("KERNEL_OK")
</pallas_src>

<mosaic_0001>
module attributes {stable_mosaic.version = 11 : i64} {
  func.func @_dotprod_attn_kernel(%arg0: i32, %arg1: memref<2x8x32xf32, #tpu.memory_space<vmem>>, %arg2: memref<2x32xf32, #tpu.memory_space<vmem>>, %arg3: memref<2x8xf32, #tpu.memory_space<vmem>>, %arg4: memref<2x32xf32, #tpu.memory_space<vmem>>) attributes {dimension_semantics = [#tpu.dimension_semantics<parallel>], iteration_bounds = array<i64: 1>, scalar_prefetch = 0 : i64, scratch_operands = 0 : i64, tpu.core_type = #tpu.core_type<tc>, window_params = [{transform_indices = @transform_0, window_bounds = array<i64: 2, 8, 32>}, {transform_indices = @transform_1, window_bounds = array<i64: 2, 32>}, {transform_indices = @transform_2, window_bounds = array<i64: 2, 8>}, {transform_indices = @transform_3, window_bounds = array<i64: 2, 32>}]} {
    %c0 = arith.constant 0 : index
    %c0_0 = arith.constant 0 : index
    %c0_1 = arith.constant 0 : index
    %0 = vector.load %arg1[%c0, %c0_0, %c0_1] : memref<2x8x32xf32, #tpu.memory_space<vmem>>, vector<2x8x32xf32>
    %c0_2 = arith.constant 0 : index
    %c0_3 = arith.constant 0 : index
    %1 = vector.load %arg2[%c0_2, %c0_3] : memref<2x32xf32, #tpu.memory_space<vmem>>, vector<2x32xf32>
    %c0_4 = arith.constant 0 : index
    %c0_5 = arith.constant 0 : index
    %2 = vector.load %arg3[%c0_4, %c0_5] : memref<2x8xf32, #tpu.memory_space<vmem>>, vector<2x8xf32>
    %3 = vector.shape_cast %1 : vector<2x32xf32> to vector<2x1x32xf32>
    %4 = vector.broadcast %3 : vector<2x1x32xf32> to vector<2x8x32xf32>
    %5 = arith.mulf %0, %4 : vector<2x8x32xf32>
    %cst = arith.constant dense<0.000000e+00> : vector<2x8xf32>
    %6 = vector.multi_reduction <add>, %5, %cst [2] : vector<2x8x32xf32> to vector<2x8xf32>
    %7 = arith.mulf %6, %2 : vector<2x8xf32>
    %cst_6 = arith.constant 1.000000e+00 : f32
    %8 = vector.broadcast %cst_6 : f32 to vector<2x8xf32>
    %9 = arith.subf %8, %2 : vector<2x8xf32>
    %cst_7 = arith.constant -1.000000e+30 : f32
    %10 = vector.broadcast %cst_7 : f32 to vector<2x8xf32>
    %11 = arith.mulf %9, %10 : vector<2x8xf32>
    %12 = arith.addf %7, %11 : vector<2x8xf32>
    %cst_8 = arith.constant dense<0xFF800000> : vector<2xf32>
    %13 = vector.multi_reduction <maximumf>, %12, %cst_8 [1] : vector<2x8xf32> to vector<2xf32>
    %14 = vector.shape_cast %13 : vector<2xf32> to vector<2x1xf32>
    %15 = vector.broadcast %14 : vector<2x1xf32> to vector<2x8xf32>
    %16 = arith.subf %12, %15 : vector<2x8xf32>
    %17 = math.exp %16 : vector<2x8xf32>
    %cst_9 = arith.constant dense<0.000000e+00> : vector<2xf32>
    %18 = vector.multi_reduction <add>, %17, %cst_9 [1] : vector<2x8xf32> to vector<2xf32>
    %19 = vector.shape_cast %18 : vector<2xf32> to vector<2x1xf32>
    %20 = vector.broadcast %19 : vector<2x1xf32> to vector<2x8xf32>
    %21 = arith.divf %17, %20 : vector<2x8xf32>
    %22 = vector.shape_cast %21 : vector<2x8xf32> to vector<2x8x1xf32>
    %23 = vector.broadcast %22 : vector<2x8x1xf32> to vector<2x8x32xf32>
    %24 = arith.mulf %0, %23 : vector<2x8x32xf32>
    %cst_10 = arith.constant dense<0.000000e+00> : vector<2x32xf32>
    %25 = vector.multi_reduction <add>, %24, %cst_10 [1] : vector<2x8x32xf32> to vector<2x32xf32>
    %c0_11 = arith.constant 0 : index
    %c0_12 = arith.constant 0 : index
    %26 = vector.load %arg4[%c0_11, %c0_12] : memref<2x32xf32, #tpu.memory_space<vmem>>, vector<2x32xf32>
    tpu.vector_store %arg4[%c0_11, %c0_12], %25 {strides = array<i32>} : memref<2x32xf32, #tpu.memory_space<vmem>>, vector<2x32xf32>,
    return
  }
  func.func @transform_0(%arg0: i32) -> (i32, i32, i32) {
    %c0_i32 = arith.constant 0 : i32
    %c0_i32_0 = arith.constant 0 : i32
    %c0_i32_1 = arith.constant 0 : i32
    return %arg0, %c0_i32, %c0_i32_0 : i32, i32, i32
  }
  func.func @transform_1(%arg0: i32) -> (i32, i32) {
    %c0_i32 = arith.constant 0 : i32
    %c0_i32_0 = arith.constant 0 : i32
    return %arg0, %c0_i32 : i32, i32
  }
  func.func @transform_2(%arg0: i32) -> (i32, i32) {
    %c0_i32 = arith.constant 0 : i32
    %c0_i32_0 = arith.constant 0 : i32
    return %arg0, %c0_i32 : i32, i32
  }
  func.func @transform_3(%arg0: i32) -> (i32, i32) {
    %c0_i32 = arith.constant 0 : i32
    %c0_i32_0 = arith.constant 0 : i32
    return %arg0, %c0_i32 : i32, i32
  }
}

</mosaic_0001>

<llo_original>
// kernel: tpu_custom_call.1
$region0: #{tpu_custom_call.1}
  #allocation0 [shape = 'u32[]', space=smem, size = 0x4, offset = 0x4, fixed_abs, tag = 'smem constant byte address 0x4 - core index']
  #allocation1 [shape = 'u32[144,128]{1,0:T(1,128)}', space=vmem, size = 0x12000, scoped, tag = 'internal scratch']
  %s0 = inlined_call_operand.hbm [shape: f32[2,8,32], index: 0, kind: input, shape index: {}]
  %s1 = inlined_call_operand.vmem [shape: f32[2,32], index: 1, kind: input, shape index: {}]
  %s2 = inlined_call_operand.vmem [shape: f32[2,8], index: 2, kind: input, shape index: {}]
  %s3 = inlined_call_operand.hbm [shape: f32[2,32], index: 3, kind: output, shape index: {}]
  %s4 = sld [smem:[#allocation0]]
  $region26: #{tpu_custom_call.1} parent=0
    _
  %s6 = ssub.s32 1, %s4
  %s7 = scalar_select 0, %s6, %s4
  $region1: #{tpu_custom_call.1} parent=0
    #allocation2 [shape = 'u8[8192]{0}', space=vmem, size = 0x2000, scoped, tag = 'input window, operand 0, single buffered']
    #allocation3 [shape = 's32[1]{0}', space=sflag, size = 0x4, scoped, tag = 'scoped memory for tpu_custom_call.1']
    #allocation4 [shape = 's32[1]{0}', space=sflag, size = 0x4, scoped, tag = 'scoped memory for tpu_custom_call.1']
    #allocation5 [shape = 'u8[1024]{0}', space=vmem, size = 0x400, scoped, tag = 'output window, operand 0, single buffered']
    %8 = vsyncpa [#allocation3], 0
    %9 = vsyncpa [#allocation4], 0
    // Predicated region
    $region2: #{tpu_custom_call.1} parent=1 // pred_check
      _
    $region3: #{tpu_custom_call.1} parent=1 // pred_check_branch
      %11 = sbr.rel (0) target = $region5
    $region4: #{tpu_custom_call.1} parent=1 // pred_region
      %s13 = ssub.s32 256, 256
      %14 = vsyncadd [#allocation3], %s13
      %s15 = sshll.u32 [#allocation2], 4
      %s16 = int_to_ptr.vmem [resolvable:$true] %s15
      %21 = dma.hbm_to_vmem [thread:$0]  %s0, 256, %s16, [#allocation3], 128, 128, 8
    $region5: #{tpu_custom_call.1} parent=1 // pred_fallthru
      _
    // Predicated region
    $region6: #{tpu_custom_call.1} parent=1 // pred_check
      _
    $region7: #{tpu_custom_call.1} parent=1 // pred_check_branch
      %23 = sbr.rel (0) target = $region9
    $region8: #{tpu_custom_call.1} parent=1 // pred_region
      _
    $region9: #{tpu_custom_call.1} parent=1 // pred_fallthru
      _
    // Predicated region
    $region10: #{tpu_custom_call.1} parent=1 // pred_check
      _
    $region11: #{tpu_custom_call.1} parent=1 // pred_check_branch
      %25 = sbr.rel (0) target = $region13
    $region12: #{tpu_custom_call.1} parent=1 // pred_region
      _
    $region13: #{tpu_custom_call.1} parent=1 // pred_fallthru
      _
    // Predicated region
    $region14: #{tpu_custom_call.1} parent=1 // pred_check
      _
    $region15: #{tpu_custom_call.1} parent=1 // pred_check_branch
      %27 = sbr.rel (0) target = $region17
    $region16: #{tpu_custom_call.1} parent=1 // pred_region
      %28 = dma.done [#allocation3], 256
    $region17: #{tpu_custom_call.1} parent=1 // pred_fallthru
      _
    %v29 = vld [vmem:[#allocation2] sm:$0xff]
    %v30 = vld [vmem:[#allocation2 + $0x8] sm:$0xff]
    %v31 = vld [vmem:[%s1] sm:$0x3]
    %v32 = vld [vmem:[%s2] sm:$0x3]
    %v35 = vunpack.c.l.s4 1966171168
    %v36 = vunpack.c.0.s8 %v35
    %v37 = vlaneseq
    %v38 = vshrl.u32 %v37, 7
    %v39 = vsub.s32 %v36, %v38
    %v40 = vrot.slane %v31, %v39
    %v41 = vcombine.high %v40, %v40
    %v43 = vunpack.c.l.s4 1966171168
    %v44 = vunpack.c.0.s8 %v43
    %v45 = vlaneseq
    %v46 = vshrl.u32 %v45, 7
    %v47 = vsub.s32 %v44, %v46
    %v48 = vrot.slane %v40, %v47
    %v50 = vunpack.c.l.s4 1966171168
    %v51 = vunpack.c.0.s8 %v50
    %v52 = vlaneseq
    %v53 = vshrl.u32 %v52, 7
    %v54 = vsub.s32 %v51, %v53
    %v55 = vrot.slane %v41, %v54
    %v56 = vlaneseq
    %v57 = vshrl.u32 %v56, 7
    %v58 = vsub.s32 0, %v57
    %v59 = vrot.slane %v48, %v58
    %v60 = vlaneseq
    %v61 = vshrl.u32 %v60, 7
    %v62 = vsub.s32 0, %v61
    %v63 = vrot.slane %v55, %v62
    %v66 = vmul.f32 %v29, %v59
    %v67 = vmul.f32 %v30, %v63
    %vm68 = vcmask 261120
    %v69 = vsel %vm68, %v66, 0.0
    %70 = vadd.xlane.f32.xlu0 %v69
    %v71 = vpop.xlane.xlu0 %70
    %v72 = vsel %vm68, %v67, 0.0
    %73 = vadd.xlane.f32.xlu0 %v72
    %v74 = vpop.xlane.xlu0 %73
    %v76 = vlaneseq
    %v77 = vshrl.u32 %v76, 7
    %v78 = vsub.s32 0, %v77
    %v79 = vrot.slane %v32, %v78
    %81 = vbcast.lane.b32.xlu0 %v79, 256
    %v82 = vpop.permute.xlu0 %81
    %v83 = vlaneseq
    %v84 = vshrl.u32 %v83, 7
    %v85 = vsub.s32 1, %v84
    %v86 = vrot.slane %v32, %v85
    %88 = vbcast.lane.b32.xlu0 %v86, 256
    %v89 = vpop.permute.xlu0 %88
    %v92 = vmul.f32 %v71, %v82
    %v93 = vmul.f32 %v74, %v89
    %v94 = vsub.f32 1.0, %v32
    %v95 = vmul.f32 %v94, -1e+30
    %v97 = vlaneseq
    %v98 = vshrl.u32 %v97, 7
    %v99 = vsub.s32 0, %v98
    %v100 = vrot.slane %v95, %v99
    %102 = vbcast.lane.b32.xlu0 %v100, 256
    %v103 = vpop.permute.xlu0 %102
    %v104 = vlaneseq
    %v105 = vshrl.u32 %v104, 7
    %v106 = vsub.s32 1, %v105
    %v107 = vrot.slane %v95, %v106
    %109 = vbcast.lane.b32.xlu0 %v107, 256
    %v110 = vpop.permute.xlu0 %109
    %v113 = vadd.f32 %v92, %v103
    %v114 = vadd.f32 %v93, %v110
    %117 = vset.pattern.permute.xlu0 0
    %118 = vperm.xlu0 %117, %v113
    %v119 = vpop.permute.xlu0 %118
    %120 = vset.pattern.permute.xlu0 0
    %121 = vperm.xlu0 %120, %v114
    %v122 = vpop.permute.xlu0 %121
    %v123 = vlaneseq
    %v124 = vand.u32 %v123, 127
    %v125 = vlaneseq
    %v126 = vshrl.u32 %v125, 7
    %v127 = vsub.s32 %v124, %v126
    %v128 = vrot.slane %v119, %v127
    %v129 = vlaneseq
    %v130 = vshrl.u32 %v129, 7
    %v131 = vsub.s32 %v124, %v130
    %v132 = vrot.slane %v122, %v131
    %vm133 = vcmask 1041409
    %v134 = vsel %vm133, %v132, %v128
    %vm136 = vcmask 58368
    %v137 = vsel %vm136, %v134, -inf
    %138 = vmax.xlane.f32.xlu0 %v137
    %v139 = vpop.xlane.xlu0 %138
    %v141 = vlaneseq
    %v142 = vshrl.u32 %v141, 7
    %v143 = vsub.s32 0, %v142
    %v144 = vrot.slane %v139, %v143
    %v145 = vlaneseq
    %v146 = vshrl.u32 %v145, 7
    %v147 = vsub.s32 1, %v146
    %v148 = vrot.slane %v139, %v147
    %v151 = vsub.f32 %v113, %v144
    %v152 = vsub.f32 %v114, %v148
    %v153 = vmul.f32 %v151, 1.442695
    %v154 = vpow.pop %v153
    %v155 = vmul.f32 %v152, 1.442695
    %v156 = vpow.pop %v155
    %159 = vset.pattern.permute.xlu0 0
    %160 = vperm.xlu0 %159, %v154
    %v161 = vpop.permute.xlu0 %160
    %162 = vset.pattern.permute.xlu0 0
    %163 = vperm.xlu0 %162, %v156
    %v164 = vpop.permute.xlu0 %163
    %v165 = vlaneseq
    %v166 = vshrl.u32 %v165, 7
    %v167 = vsub.s32 %v124, %v166
    %v168 = vrot.slane %v161, %v167
    %v169 = vlaneseq
    %v170 = vshrl.u32 %v169, 7
    %v171 = vsub.s32 %v124, %v170
    %v172 = vrot.slane %v164, %v171
    %v173 = vsel %vm133, %v172, %v168
    %v175 = vsel %vm136, %v173, 0.0
    %176 = vadd.xlane.f32.xlu0 %v175
    %v177 = vpop.xlane.xlu0 %176
    %v179 = vlaneseq
    %v180 = vshrl.u32 %v179, 7
    %v181 = vsub.s32 0, %v180
    %v182 = vrot.slane %v177, %v181
    %v183 = vlaneseq
    %v184 = vshrl.u32 %v183, 7
    %v185 = vsub.s32 1, %v184
    %v186 = vrot.slane %v177, %v185
    %v189 = vrcp.pop %v182
    %v190 = vmul.f32 %v154, %v189
    %v191 = vrcp.pop %v186
    %v192 = vmul.f32 %v156, %v191
    %194 = vset.pattern.permute.xlu0 0
    %195 = vperm.xlu0 %194, %v190
    %v196 = vpop.permute.xlu0 %195
    %199 = vset.pattern.permute.xlu0 0
    %200 = vperm.xlu0 %199, %v192
    %v201 = vpop.permute.xlu0 %200
    %v203 = vmul.f32 %v29, %v196
    %v204 = vmul.f32 %v30, %v201
    %v205 = vsel %vm68, %v203, 0.0
    %v206 = vrot.slane %v205, 4
    %v207 = vadd.f32 %v205, %v206
    %v208 = vrot.slane %v207, 2
    %v209 = vadd.f32 %v207, %v208
    %v210 = vrot.slane %v209, 1
    %v211 = vadd.f32 %v209, %v210
    %v212 = vsel %vm68, %v204, 0.0
    %v213 = vrot.slane %v212, 4
    %v214 = vadd.f32 %v212, %v213
    %v215 = vrot.slane %v214, 2
    %v216 = vadd.f32 %v214, %v215
    %v217 = vrot.slane %v216, 1
    %v218 = vadd.f32 %v216, %v217
    %v221 = vsel %vm133, %v218, %v211
    %vm223 = vcmask 254976
    %224 = vst.msk [vmem:[#allocation5] sm:$0x3] %vm223, %v221
    // Predicated region
    $region18: #{tpu_custom_call.1} parent=1 // pred_check
      _
    $region19: #{tpu_custom_call.1} parent=1 // pred_check_branch
      %226 = sbr.rel (0) target = $region21
    $region20: #{tpu_custom_call.1} parent=1 // pred_region
      %s228 = ssub.s32 32, 32
      %229 = vsyncadd [#allocation4], %s228
      %s231 = sshll.u32 [#allocation5], 4
      %s232 = int_to_ptr.vmem [resolvable:$true] %s231
      %234 = dma.vmem_to_hbm [thread:$0]  %s232, 32, %s3, [#allocation4]
    $region21: #{tpu_custom_call.1} parent=1 // pred_fallthru
      _
    // Predicated region
    $region22: #{tpu_custom_call.1} parent=1 // pred_check
      _
    $region23: #{tpu_custom_call.1} parent=1 // pred_check_branch
      %236 = sbr.rel (0) target = $region25
    $region24: #{tpu_custom_call.1} parent=1 // pred_region
      %237 = dma.done [#allocation4], 32
    $region25: #{tpu_custom_call.1} parent=1 // pred_fallthru
      _
    %238 = vsyncpa [#allocation3], 1
    %239 = vsyncpa [#allocation4], 1

</llo_original>
